<compile_context>
chip_gen: v5e
topology: v5e:2x2
jax: 0.10.0
libtpu: 0.0.40
codegen_flags: <defaults>
</compile_context>

<pallas_src>
import functools
import math

import jax
import jax.numpy as jnp
from jax.experimental import pallas as pl
from jax.experimental.pallas import tpu as pltpu

LAYER_SIZES = [3, 3, 3, 3, 3, 1]
NUM_LAYERS = len(LAYER_SIZES) - 1
USE_SHORTCUT = True

MAXF = max(LAYER_SIZES)          # widest logical feature dim (=3)
OUT_F = LAYER_SIZES[-1]          # final output width (=1)


def _round_up(a, m):
    return -(-a // m) * m


def _gelu(x):
    # GELU tanh approximation, identical to the PyTorch GELU module.
    c = math.sqrt(2.0 / math.pi)
    return 0.5 * x * (1.0 + jnp.tanh(c * (x + 0.044715 * x * x * x)))


# ----------------------------------------------------------------------------
# Standalone GELU kernel (the spec module, elementwise).
# ----------------------------------------------------------------------------
def _gelu_kernel(x_ref, o_ref):
    o_ref[...] = _gelu(x_ref[...])


@jax.jit
def gelu_forward(x):
    return pl.pallas_call(
        _gelu_kernel,
        out_shape=jax.ShapeDtypeStruct(x.shape, x.dtype),
    )(x)


# ----------------------------------------------------------------------------
# Full section-4.4 DNN forward (feature-major, VPU-only, no MXU).
# ----------------------------------------------------------------------------
def _dnn_kernel(x_ref, w_ref, b_ref, o_ref, *, use_shortcut):
    """One batch tile (all samples on lanes) through all 5 layers.

    x_ref: (3, TB) f32 VMEM   (features on sublanes, batch on lanes)
    w_ref: (NUM_LAYERS*MAXF*MAXF,) f32 SMEM   w[(i*MAXF+k)*MAXF+j] = W_i[k, j]
    b_ref: (NUM_LAYERS*MAXF,)      f32 SMEM   b[i*MAXF+j]         = b_i[j]
    o_ref: (OUT_F, TB) f32 VMEM
    """
    rows = [x_ref[k:k + 1, :] for k in range(LAYER_SIZES[0])]   # (1, TB) each
    for i in range(NUM_LAYERS):
        fin, fout = LAYER_SIZES[i], LAYER_SIZES[i + 1]
        new_rows = []
        for j in range(fout):
            acc = w_ref[(i * MAXF + 0) * MAXF + j] * rows[0]
            for k in range(1, fin):
                acc = acc + w_ref[(i * MAXF + k) * MAXF + j] * rows[k]
            acc = acc + b_ref[i * MAXF + j]
            new_rows.append(_gelu(acc))
        # PyTorch checks x.shape == layer_output.shape; with the static layer
        # sizes that holds exactly when in/out widths match.
        if use_shortcut and fin == fout:
            rows = [r + n for r, n in zip(rows, new_rows)]
        else:
            rows = new_rows
    for j in range(OUT_F):
        o_ref[j:j + 1, :] = rows[j]


def pack_params(weights, biases):
    """Pack params once at init into tiny flat f32 tables (live in SMEM).

    weights[i]: [in_i, out_i] (nn.Linear weight already transposed),
    biases[i]: [out_i].
    """
    w_flat = jnp.zeros((NUM_LAYERS * MAXF * MAXF,), jnp.float32)
    b_flat = jnp.zeros((NUM_LAYERS * MAXF,), jnp.float32)
    for i, (w, b) in enumerate(zip(weights, biases)):
        fin, fout = w.shape
        for k in range(fin):
            base = (i * MAXF + k) * MAXF
            w_flat = w_flat.at[base:base + fout].set(w[k].astype(jnp.float32))
        b_flat = b_flat.at[i * MAXF:i * MAXF + fout].set(b.astype(jnp.float32))
    return w_flat, b_flat


@functools.partial(jax.jit, static_argnames=("use_shortcut",))
def example_dnn_forward(x, w_flat, b_flat, use_shortcut=True):
    """x: [B, 3] float32. Params must come from pack_params."""
    B, F0 = x.shape

    # Batch tile on lanes: multiple of 128, up to 2048, and capped so that
    # larger batches always produce >= 2 grid steps (v7x megacore sharding).
    B128 = _round_up(max(B, 1), 128)
    if B128 <= 512:
        TB = B128
    else:
        TB = min(2048, _round_up(-(-B128 // 2), 128))
    B_pad = _round_up(B, TB)

    # Feature-major input slab: (3, B_pad) f32 -- 12 B/sample of HBM traffic.
    xt = jnp.zeros((F0, B_pad), jnp.float32).at[:, :B].set(
        x.astype(jnp.float32).T)

    kernel = functools.partial(_dnn_kernel, use_shortcut=use_shortcut)
    out_p = pl.pallas_call(
        kernel,
        out_shape=jax.ShapeDtypeStruct((OUT_F, B_pad), jnp.float32),
        grid=(B_pad // TB,),
        in_specs=[
            pl.BlockSpec((F0, TB), lambda i: (0, i)),                  # x tile
            pl.BlockSpec(memory_space=pltpu.MemorySpace.SMEM),         # weights
            pl.BlockSpec(memory_space=pltpu.MemorySpace.SMEM),         # biases
        ],
        out_specs=pl.BlockSpec((OUT_F, TB), lambda i: (0, i)),
        compiler_params=pltpu.CompilerParams(
            dimension_semantics=("parallel",)),
    )(xt, w_flat, b_flat)

    return out_p[:, :B].T                                              # [B, 1]


def reference_forward(x, weights, biases, use_shortcut):
    """Pure-JAX f32 reference matching the PyTorch module."""
    act = x.astype(jnp.float32)
    for w, b in zip(weights, biases):
        y = _gelu(act @ w.astype(jnp.float32) + b.astype(jnp.float32))
        if use_shortcut and act.shape == y.shape:
            act = act + y
        else:
            act = y
    return act


if __name__ == "__main__":
    key = jax.random.PRNGKey(0)

    # Deterministic parameter init (Linear weights stored as [in, out]).
    weights, biases = [], []
    for i in range(NUM_LAYERS):
        fin, fout = LAYER_SIZES[i], LAYER_SIZES[i + 1]
        key, kw, kb = jax.random.split(key, 3)
        bound = 1.0 / math.sqrt(fin)
        weights.append(jax.random.uniform(kw, (fin, fout), jnp.float32,
                                          minval=-bound, maxval=bound))
        biases.append(jax.random.uniform(kb, (fout,), jnp.float32,
                                         minval=-bound, maxval=bound))

    # Pack once at init; tiny flat tables live on device and go to SMEM.
    w_flat, b_flat = pack_params(weights, biases)

    # 1) Standalone GELU kernel == the spec module, checked elementwise.
    key, kg = jax.random.split(key)
    xg = jax.random.normal(kg, (8, 128), jnp.float32)
    og = jax.block_until_ready(gelu_forward(xg))
    assert jnp.allclose(og, _gelu(xg), atol=1e-4, rtol=1e-4)

    # 2) Small example consistent with the module: batch=2, features=3.
    key, kx = jax.random.split(key)
    x = jax.random.normal(kx, (2, LAYER_SIZES[0]), jnp.float32)
    out = jax.block_until_ready(
        example_dnn_forward(x, w_flat, b_flat, use_shortcut=USE_SHORTCUT))
    ref = reference_forward(x, weights, biases, USE_SHORTCUT)
    assert out.shape == (2, 1), out.shape
    assert jnp.allclose(out, ref, atol=1e-4, rtol=1e-4), (out, ref)

    # 3) Larger batch exercising the multi-step "parallel" grid (TB=512, grid=2).
    key, kx2 = jax.random.split(key)
    x2 = jax.random.normal(kx2, (1024, LAYER_SIZES[0]), jnp.float32)
    out2 = jax.block_until_ready(
        example_dnn_forward(x2, w_flat, b_flat, use_shortcut=USE_SHORTCUT))
    ref2 = reference_forward(x2, weights, biases, USE_SHORTCUT)
    assert out2.shape == (1024, 1), out2.shape
    assert jnp.allclose(out2, ref2, atol=1e-4, rtol=1e-4)

    print("KERNEL_OK")
</pallas_src>

<mosaic_0001>
module attributes {stable_mosaic.version = 11 : i64} {
  func.func @_gelu_kernel(%arg0: memref<8x128xf32, #tpu.memory_space<vmem>>, %arg1: memref<8x128xf32, #tpu.memory_space<vmem>>) attributes {dimension_semantics = [], scalar_prefetch = 0 : i64, scratch_operands = 0 : i64, tpu.core_type = #tpu.core_type<tc>} {
    %c0 = arith.constant 0 : index
    %c0_0 = arith.constant 0 : index
    %0 = vector.load %arg0[%c0, %c0_0] : memref<8x128xf32, #tpu.memory_space<vmem>>, vector<8x128xf32>
    %cst = arith.constant 5.000000e-01 : f32
    %1 = vector.broadcast %cst : f32 to vector<8x128xf32>
    %2 = arith.mulf %1, %0 : vector<8x128xf32>
    %cst_1 = arith.constant 4.471500e-02 : f32
    %3 = vector.broadcast %cst_1 : f32 to vector<8x128xf32>
    %4 = arith.mulf %3, %0 : vector<8x128xf32>
    %5 = arith.mulf %4, %0 : vector<8x128xf32>
    %6 = arith.mulf %5, %0 : vector<8x128xf32>
    %7 = arith.addf %0, %6 : vector<8x128xf32>
    %cst_2 = arith.constant 0.797884583 : f32
    %8 = vector.broadcast %cst_2 : f32 to vector<8x128xf32>
    %9 = arith.mulf %8, %7 : vector<8x128xf32>
    %10 = math.tanh %9 : vector<8x128xf32>
    %cst_3 = arith.constant 1.000000e+00 : f32
    %11 = vector.broadcast %cst_3 : f32 to vector<8x128xf32>
    %12 = arith.addf %11, %10 : vector<8x128xf32>
    %13 = arith.mulf %2, %12 : vector<8x128xf32>
    %c0_4 = arith.constant 0 : index
    %c0_5 = arith.constant 0 : index
    %14 = vector.load %arg1[%c0_4, %c0_5] : memref<8x128xf32, #tpu.memory_space<vmem>>, vector<8x128xf32>
    tpu.vector_store %arg1[%c0_4, %c0_5], %13 {strides = array<i32>} : memref<8x128xf32, #tpu.memory_space<vmem>>, vector<8x128xf32>,
    return
  }
}

</mosaic_0001>

<llo_original>
// kernel: gelu_forward.1
$region0: #{gelu_forward.1}
  #allocation0 [shape = 'u32[]', space=smem, size = 0x4, offset = 0x4, fixed_abs, tag = 'smem constant byte address 0x4 - core index']
  #allocation1 [shape = 'u32[72,128]{1,0:T(1,128)}', space=vmem, size = 0x9000, scoped, tag = 'internal scratch']
  %s0 = inlined_call_operand.hbm [shape: f32[8,128], index: 0, kind: input, shape index: {}]
  %s1 = inlined_call_operand.hbm [shape: f32[8,128], index: 1, kind: output, shape index: {}]
  %s2 = sld [smem:[#allocation0]]
  $region18: #{gelu_forward.1} parent=0
    _
  %s4 = ssub.s32 1, %s2
  %s5 = scalar_select 0, %s4, %s2
  $region1: #{gelu_forward.1} parent=0
    #allocation2 [shape = 'u8[4096]{0}', space=vmem, size = 0x1000, scoped, tag = 'input window, operand 0, single buffered']
    #allocation3 [shape = 's32[1]{0}', space=sflag, size = 0x4, scoped, tag = 'scoped memory for gelu_forward.1']
    #allocation4 [shape = 's32[1]{0}', space=sflag, size = 0x4, scoped, tag = 'scoped memory for gelu_forward.1']
    #allocation5 [shape = 'u8[4096]{0}', space=vmem, size = 0x1000, scoped, tag = 'output window, operand 0, single buffered']
    %6 = vsyncpa [#allocation3], 0
    %7 = vsyncpa [#allocation4], 0
    // Predicated region
    $region2: #{gelu_forward.1} parent=1 // pred_check
      _
    $region3: #{gelu_forward.1} parent=1 // pred_check_branch
      %9 = sbr.rel (0) target = $region5
    $region4: #{gelu_forward.1} parent=1 // pred_region
      %11 = vsyncadd [#allocation3], 0
      %s13 = sshll.u32 %s0, 4
      %s14 = int_to_ptr.hbm [resolvable:$true] %s13
      %s15 = sshll.u32 [#allocation2], 4
      %s16 = int_to_ptr.vmem [resolvable:$true] %s15
      %18 = dma.hbm_to_vmem [thread:$0]  %s14, 128, %s16, [#allocation3]
    $region5: #{gelu_forward.1} parent=1 // pred_fallthru
      _
    // Predicated region
    $region6: #{gelu_forward.1} parent=1 // pred_check
      _
    $region7: #{gelu_forward.1} parent=1 // pred_check_branch
      %20 = sbr.rel (0) target = $region9
    $region8: #{gelu_forward.1} parent=1 // pred_region
      %22 = dma.done [#allocation3], 128
    $region9: #{gelu_forward.1} parent=1 // pred_fallthru
      _
    %v23 = vld [vmem:[#allocation2] sm:$0xff]
    %v24 = vmul.f32 %v23, 0.5
    %v25 = vmul.f32 %v23, 0.044715
    %v26 = vmul.f32 %v25, %v23
    %v27 = vmul.f32 %v26, %v23
    %v28 = vadd.f32 %v23, %v27
    %v29 = vmul.f32 %v28, 0.7978846
    %v30 = vtanh.pop %v29
    %v31 = vadd.f32 %v30, 1.0
    %v32 = vmul.f32 %v24, %v31
    %33 = vst [vmem:[#allocation5] sm:$0xff] %v32
    // Predicated region
    $region10: #{gelu_forward.1} parent=1 // pred_check
      _
    $region11: #{gelu_forward.1} parent=1 // pred_check_branch
      %35 = sbr.rel (0) target = $region13
    $region12: #{gelu_forward.1} parent=1 // pred_region
      %37 = vsyncadd [#allocation4], 0
      %s39 = sshll.u32 [#allocation5], 4
      %s40 = int_to_ptr.vmem [resolvable:$true] %s39
      %s41 = sshll.u32 %s1, 4
      %s42 = int_to_ptr.hbm [resolvable:$true] %s41
      %44 = dma.vmem_to_hbm [thread:$0]  %s40, 128, %s42, [#allocation4]
    $region13: #{gelu_forward.1} parent=1 // pred_fallthru
      _
    // Predicated region
    $region14: #{gelu_forward.1} parent=1 // pred_check
      _
    $region15: #{gelu_forward.1} parent=1 // pred_check_branch
      %46 = sbr.rel (0) target = $region17
    $region16: #{gelu_forward.1} parent=1 // pred_region
      %48 = dma.done [#allocation4], 128
    $region17: #{gelu_forward.1} parent=1 // pred_fallthru
      _
    %49 = vsyncpa [#allocation3], 1
    %50 = vsyncpa [#allocation4], 1

</llo_original>
